<compile_context>
chip_gen: v5e
topology: v5e:2x2
jax: 0.10.0
libtpu: 0.0.40
codegen_flags: <defaults>
</compile_context>

<pallas_src>
import jax
import jax.numpy as jnp
from jax.experimental import pallas as pl
from jax.experimental.pallas import tpu as pltpu

PHOS_W = 4.5
PHOC_W = 1.0


def _cdiv(a, b):
    return -(-a // b)


def _round_up(a, m):
    return _cdiv(a, m) * m


def _detect_num_shards():
    # v7x has 2 TensorCores per chip; v5e / v6e have 1.  The extra "parallel" shard axis
    # is pure overhead on single-TC parts, so only enable it on v7x.
    try:
        kind = jax.devices()[0].device_kind.lower()
        if "v7" in kind:
            return 2
    except Exception:
        pass
    return 1


def _phosc_loss_kernel(n_ref, yphos_ref, tphos_ref, yphoc_ref, tphoc_ref,
                       out_ref, acc_sq_ref, acc_ce_ref):
    s = pl.program_id(0)
    t = pl.program_id(1)
    tiles_per_shard = pl.num_programs(1)
    tile_n = yphoc_ref.shape[0]

    @pl.when(t == 0)
    def _init():
        acc_sq_ref[...] = jnp.zeros_like(acc_sq_ref)
        acc_ce_ref[...] = jnp.zeros_like(acc_ce_ref)

    # ---- row validity mask: handles the ragged last tile and over-shard duplicates ----
    row0 = (s * tiles_per_shard + t) * tile_n
    rows = row0 + jax.lax.broadcasted_iota(jnp.int32, (tile_n, 1), 0)
    valid = rows < n_ref[0]                                   # (tile_n, 1) bool

    # ---- phos: partial per-row sum of squared error (VPU + one lane reduce) ----
    yp = yphos_ref[...].astype(jnp.float32)
    tp = tphos_ref[...].astype(jnp.float32)
    diff = jnp.where(valid, yp - tp, 0.0)                     # garbage rows -> 0
    acc_sq_ref[...] += jnp.sum(diff * diff, axis=-1, keepdims=True)

    # ---- phoc: soft-target cross-entropy, factored (no (tile, D) logp intermediate) ----
    logits = jnp.where(valid, yphoc_ref[...].astype(jnp.float32), 0.0)
    tgt = jnp.where(valid, tphoc_ref[...].astype(jnp.float32), 0.0)
    m = jnp.max(logits, axis=-1, keepdims=True)               # stable softmax shift
    z = logits - m
    lse = jnp.log(jnp.sum(jnp.exp(z), axis=-1, keepdims=True))  # (tile_n, 1)
    tsum = jnp.sum(tgt, axis=-1, keepdims=True)                 # (tile_n, 1)
    tz = jnp.sum(tgt * z, axis=-1, keepdims=True)               # (tile_n, 1)
    # row CE == lse*sum(t) - sum(t*z); masked rows contribute exactly 0 (tsum == tz == 0)
    acc_ce_ref[...] += lse * tsum - tz

    @pl.when(t == tiles_per_shard - 1)
    def _finalize():
        total_sq = jnp.sum(acc_sq_ref[...])
        total_ce = jnp.sum(acc_ce_ref[...])
        sub = jax.lax.broadcasted_iota(jnp.int32, (1, 8, 128), 1)
        lane = jax.lax.broadcasted_iota(jnp.int32, (1, 8, 128), 2)
        out_ref[...] = jnp.where(
            (sub == 0) & (lane == 0), total_sq,
            jnp.where((sub == 0) & (lane == 1), total_ce, 0.0))


def phosc_loss(y_phos, t_phos, y_phoc, t_phoc, *, phos_w=PHOS_W, phoc_w=PHOC_W):
    n, d_phos = y_phos.shape
    n2, d_phoc = y_phoc.shape
    assert n == n2
    assert t_phos.shape == y_phos.shape and t_phoc.shape == y_phoc.shape

    num_shards = _detect_num_shards()
    num_shards = max(1, min(num_shards, n // 8))      # don't over-shard tiny batches

    isz = lambda x: jnp.dtype(x.dtype).itemsize
    bytes_per_row = (d_phos * (isz(y_phos) + isz(t_phos))
                     + d_phoc * (isz(y_phoc) + isz(t_phoc)))

    # -------- byte-targeted tile: ~12 MiB = 2x (double-buffered) inputs + accumulators ----
    rows_per_shard = _cdiv(n, num_shards)
    target_bytes = 12 << 20
    tile_n = (target_bytes // max(1, 2 * bytes_per_row + 1024)) // 8 * 8
    tile_n = max(8, min(tile_n, _round_up(rows_per_shard, 8)))
    tiles_per_shard = _cdiv(rows_per_shard, tile_n)

    # Last row-block that still touches real data; index maps clamp to it so a shard's
    # trailing tiles never issue a fully out-of-bounds DMA (kernel masks them to 0 anyway).
    last_row_block = _cdiv(n, tile_n) - 1

    def row_map(s, t, n_ref):
        return (jnp.minimum(s * tiles_per_shard + t, last_row_block), 0)

    phos_spec = pl.BlockSpec((tile_n, d_phos), row_map)
    phoc_spec = pl.BlockSpec((tile_n, d_phoc), row_map)

    # -------- VMEM budget: double-buffered inputs + (tile_n,1) accumulators + headroom ----
    step_in_bytes = tile_n * bytes_per_row
    acc_bytes = 2 * tile_n * 512                       # (tile_n,1) f32 lane-padded layout
    vmem_bytes = int(min(48 << 20,                     # 48 MiB cap: headroom on v7x (64 MiB VMEM)
                         max(16 << 20, 2 * step_in_bytes + acc_bytes + (8 << 20))))

    n_arr = jnp.array([n], dtype=jnp.int32)

    partials = pl.pallas_call(
        _phosc_loss_kernel,
        out_shape=jax.ShapeDtypeStruct((num_shards, 8, 128), jnp.float32),
        grid_spec=pltpu.PrefetchScalarGridSpec(
            num_scalar_prefetch=1,                     # n -> SMEM, used for ragged-row masking
            grid=(num_shards, tiles_per_shard),
            in_specs=[phos_spec, phos_spec, phoc_spec, phoc_spec],
            out_specs=pl.BlockSpec((1, 8, 128), lambda s, t, n_ref: (s, 0, 0)),
            scratch_shapes=[pltpu.VMEM((tile_n, 1), jnp.float32),
                            pltpu.VMEM((tile_n, 1), jnp.float32)],
        ),
        compiler_params=pltpu.CompilerParams(
            dimension_semantics=("parallel", "arbitrary"),
            vmem_limit_bytes=vmem_bytes,
        ),
    )(n_arr, y_phos, t_phos, y_phoc, t_phoc)

    sum_sq = jnp.sum(partials[:, 0, 0])
    sum_ce = jnp.sum(partials[:, 0, 1])
    mse = sum_sq / jnp.float32(n * d_phos)
    ce = sum_ce / jnp.float32(n)
    return phos_w * mse + phoc_w * ce


def phosc_loss_ref(y_phos, t_phos, y_phoc, t_phoc, *, phos_w=PHOS_W, phoc_w=PHOC_W):
    mse = jnp.mean((y_phos.astype(jnp.float32) - t_phos.astype(jnp.float32)) ** 2)
    logp = jax.nn.log_softmax(y_phoc.astype(jnp.float32), axis=-1)
    ce = jnp.mean(-jnp.sum(t_phoc.astype(jnp.float32) * logp, axis=-1))
    return phos_w * mse + phoc_w * ce


if __name__ == "__main__":
    key = jax.random.PRNGKey(0)
    k1, k2, k3, k4 = jax.random.split(key, 4)

    N, D_PHOS, D_PHOC = 8, 32, 64

    y_phos = jax.random.normal(k1, (N, D_PHOS), dtype=jnp.float32)
    t_phos = jax.random.uniform(k2, (N, D_PHOS), dtype=jnp.float32)

    y_phoc = jax.random.normal(k3, (N, D_PHOC), dtype=jnp.float32)
    # binary PHOC-style soft target vectors (probability/soft-target CE semantics)
    t_phoc = (jax.random.uniform(k4, (N, D_PHOC)) > 0.5).astype(jnp.float32)

    loss = jax.block_until_ready(phosc_loss(y_phos, t_phos, y_phoc, t_phoc))
    ref = jax.block_until_ready(phosc_loss_ref(y_phos, t_phos, y_phoc, t_phoc))

    assert jnp.allclose(loss, ref, rtol=1e-4, atol=1e-4), (loss, ref)
    print("KERNEL_OK")
</pallas_src>

<mosaic_0001>
module attributes {stable_mosaic.version = 11 : i64} {
  func.func @_phosc_loss_kernel(%arg0: i32, %arg1: i32, %arg2: memref<1xi32, #tpu.memory_space<smem>>, %arg3: memref<8x32xf32, #tpu.memory_space<vmem>>, %arg4: memref<8x32xf32, #tpu.memory_space<vmem>>, %arg5: memref<8x64xf32, #tpu.memory_space<vmem>>, %arg6: memref<8x64xf32, #tpu.memory_space<vmem>>, %arg7: memref<1x8x128xf32, #tpu.memory_space<vmem>>, %arg8: memref<8x1xf32, #tpu.memory_space<vmem>>, %arg9: memref<8x1xf32, #tpu.memory_space<vmem>>) attributes {dimension_semantics = [#tpu.dimension_semantics<parallel>, #tpu.dimension_semantics<arbitrary>], iteration_bounds = array<i64: 1, 1>, scalar_prefetch = 1 : i64, scratch_operands = 2 : i64, tpu.core_type = #tpu.core_type<tc>, window_params = [{transform_indices = @transform_0, window_bounds = array<i64: 8, 32>}, {transform_indices = @transform_1, window_bounds = array<i64: 8, 32>}, {transform_indices = @transform_2, window_bounds = array<i64: 8, 64>}, {transform_indices = @transform_3, window_bounds = array<i64: 8, 64>}, {transform_indices = @transform_4, window_bounds = array<i64: 1, 8, 128>}]} {
    %c0_i32 = arith.constant 0 : i32
    %0 = arith.cmpi eq, %arg1, %c0_i32 : i32
    %1 = arith.extui %0 : i1 to i32
    %c0_i32_0 = arith.constant 0 : i32
    %2 = arith.cmpi ne, %1, %c0_i32_0 : i32
    scf.if %2 {
      %cst_26 = arith.constant 0.000000e+00 : f32
      %56 = vector.broadcast %cst_26 : f32 to vector<8x1xf32>
      %c0_27 = arith.constant 0 : index
      %c0_28 = arith.constant 0 : index
      %57 = vector.load %arg8[%c0_27, %c0_28] : memref<8x1xf32, #tpu.memory_space<vmem>>, vector<8x1xf32>
      tpu.vector_store %arg8[%c0_27, %c0_28], %56 {strides = array<i32>} : memref<8x1xf32, #tpu.memory_space<vmem>>, vector<8x1xf32>,
      %cst_29 = arith.constant 0.000000e+00 : f32
      %58 = vector.broadcast %cst_29 : f32 to vector<8x1xf32>
      %c0_30 = arith.constant 0 : index
      %c0_31 = arith.constant 0 : index
      %59 = vector.load %arg9[%c0_30, %c0_31] : memref<8x1xf32, #tpu.memory_space<vmem>>, vector<8x1xf32>
      tpu.vector_store %arg9[%c0_30, %c0_31], %58 {strides = array<i32>} : memref<8x1xf32, #tpu.memory_space<vmem>>, vector<8x1xf32>,
    } else {
    }
    %c1_i32 = arith.constant 1 : i32
    %3 = arith.muli %arg0, %c1_i32 : i32
    %4 = arith.addi %3, %arg1 : i32
    %c8_i32 = arith.constant 8 : i32
    %5 = arith.muli %4, %c8_i32 : i32
    %6 = tpu.iota {dimensions = array<i32: 0>} : vector<8x1xi32>
    %7 = vector.broadcast %5 : i32 to vector<8x1xi32>
    %8 = arith.addi %7, %6 : vector<8x1xi32>
    %c0 = arith.constant 0 : index
    %9 = memref.load %arg2[%c0] : memref<1xi32, #tpu.memory_space<smem>>
    %10 = vector.broadcast %9 : i32 to vector<8x1xi32>
    %11 = arith.cmpi slt, %8, %10 : vector<8x1xi32>
    %c0_1 = arith.constant 0 : index
    %c0_2 = arith.constant 0 : index
    %12 = vector.load %arg3[%c0_1, %c0_2] : memref<8x32xf32, #tpu.memory_space<vmem>>, vector<8x32xf32>
    %c0_3 = arith.constant 0 : index
    %c0_4 = arith.constant 0 : index
    %13 = vector.load %arg4[%c0_3, %c0_4] : memref<8x32xf32, #tpu.memory_space<vmem>>, vector<8x32xf32>
    %14 = arith.subf %12, %13 : vector<8x32xf32>
    %cst = arith.constant 0.000000e+00 : f32
    %15 = vector.shape_cast %11 : vector<8x1xi1> to vector<8x1xi1>
    %16 = vector.broadcast %15 : vector<8x1xi1> to vector<8x32xi1>
    %17 = vector.broadcast %cst : f32 to vector<8x32xf32>
    %18 = arith.select %16, %14, %17 : vector<8x32xi1>, vector<8x32xf32>
    %c0_5 = arith.constant 0 : index
    %c0_6 = arith.constant 0 : index
    %19 = vector.load %arg8[%c0_5, %c0_6] : memref<8x1xf32, #tpu.memory_space<vmem>>, vector<8x1xf32>
    %20 = arith.mulf %18, %18 : vector<8x32xf32>
    %cst_7 = arith.constant dense<0.000000e+00> : vector<8xf32>
    %21 = vector.multi_reduction <add>, %20, %cst_7 [1] : vector<8x32xf32> to vector<8xf32>
    %22 = vector.shape_cast %21 : vector<8xf32> to vector<8x1xf32>
    %23 = arith.addf %19, %22 : vector<8x1xf32>
    %c0_8 = arith.constant 0 : index
    %c0_9 = arith.constant 0 : index
    %24 = vector.load %arg8[%c0_8, %c0_9] : memref<8x1xf32, #tpu.memory_space<vmem>>, vector<8x1xf32>
    tpu.vector_store %arg8[%c0_8, %c0_9], %23 {strides = array<i32>} : memref<8x1xf32, #tpu.memory_space<vmem>>, vector<8x1xf32>,
    %c0_10 = arith.constant 0 : index
    %c0_11 = arith.constant 0 : index
    %25 = vector.load %arg5[%c0_10, %c0_11] : memref<8x64xf32, #tpu.memory_space<vmem>>, vector<8x64xf32>
    %cst_12 = arith.constant 0.000000e+00 : f32
    %26 = vector.shape_cast %11 : vector<8x1xi1> to vector<8x1xi1>
    %27 = vector.broadcast %26 : vector<8x1xi1> to vector<8x64xi1>
    %28 = vector.broadcast %cst_12 : f32 to vector<8x64xf32>
    %29 = arith.select %27, %25, %28 : vector<8x64xi1>, vector<8x64xf32>
    %c0_13 = arith.constant 0 : index
    %c0_14 = arith.constant 0 : index
    %30 = vector.load %arg6[%c0_13, %c0_14] : memref<8x64xf32, #tpu.memory_space<vmem>>, vector<8x64xf32>
    %cst_15 = arith.constant 0.000000e+00 : f32
    %31 = vector.shape_cast %11 : vector<8x1xi1> to vector<8x1xi1>
    %32 = vector.broadcast %31 : vector<8x1xi1> to vector<8x64xi1>
    %33 = vector.broadcast %cst_15 : f32 to vector<8x64xf32>
    %34 = arith.select %32, %30, %33 : vector<8x64xi1>, vector<8x64xf32>
    %cst_16 = arith.constant dense<0xFF800000> : vector<8xf32>
    %35 = vector.multi_reduction <maximumf>, %29, %cst_16 [1] : vector<8x64xf32> to vector<8xf32>
    %36 = vector.shape_cast %35 : vector<8xf32> to vector<8x1xf32>
    %37 = vector.broadcast %36 : vector<8x1xf32> to vector<8x64xf32>
    %38 = arith.subf %29, %37 : vector<8x64xf32>
    %39 = math.exp %38 : vector<8x64xf32>
    %cst_17 = arith.constant dense<0.000000e+00> : vector<8xf32>
    %40 = vector.multi_reduction <add>, %39, %cst_17 [1] : vector<8x64xf32> to vector<8xf32>
    %41 = vector.shape_cast %40 : vector<8xf32> to vector<8x1xf32>
    %42 = math.log %41 : vector<8x1xf32>
    %cst_18 = arith.constant dense<0.000000e+00> : vector<8xf32>
    %43 = vector.multi_reduction <add>, %34, %cst_18 [1] : vector<8x64xf32> to vector<8xf32>
    %44 = vector.shape_cast %43 : vector<8xf32> to vector<8x1xf32>
    %45 = arith.mulf %34, %38 : vector<8x64xf32>
    %cst_19 = arith.constant dense<0.000000e+00> : vector<8xf32>
    %46 = vector.multi_reduction <add>, %45, %cst_19 [1] : vector<8x64xf32> to vector<8xf32>
    %47 = vector.shape_cast %46 : vector<8xf32> to vector<8x1xf32>
    %c0_20 = arith.constant 0 : index
    %c0_21 = arith.constant 0 : index
    %48 = vector.load %arg9[%c0_20, %c0_21] : memref<8x1xf32, #tpu.memory_space<vmem>>, vector<8x1xf32>
    %49 = arith.mulf %42, %44 : vector<8x1xf32>
    %50 = arith.subf %49, %47 : vector<8x1xf32>
    %51 = arith.addf %48, %50 : vector<8x1xf32>
    %c0_22 = arith.constant 0 : index
    %c0_23 = arith.constant 0 : index
    %52 = vector.load %arg9[%c0_22, %c0_23] : memref<8x1xf32, #tpu.memory_space<vmem>>, vector<8x1xf32>
    tpu.vector_store %arg9[%c0_22, %c0_23], %51 {strides = array<i32>} : memref<8x1xf32, #tpu.memory_space<vmem>>, vector<8x1xf32>,
    %c0_i32_24 = arith.constant 0 : i32
    %53 = arith.cmpi eq, %arg1, %c0_i32_24 : i32
    %54 = arith.extui %53 : i1 to i32
    %c0_i32_25 = arith.constant 0 : i32
    %55 = arith.cmpi ne, %54, %c0_i32_25 : i32
    scf.if %55 {
      %c0_26 = arith.constant 0 : index
      %c0_27 = arith.constant 0 : index
      %56 = vector.load %arg8[%c0_26, %c0_27] : memref<8x1xf32, #tpu.memory_space<vmem>>, vector<8x1xf32>
      %57 = vector.shape_cast %56 : vector<8x1xf32> to vector<1x8x1xf32>
      %cst_28 = arith.constant dense<0.000000e+00> : vector<1xf32>
      %58 = vector.multi_reduction <add>, %57, %cst_28 [1, 2] : vector<1x8x1xf32> to vector<1xf32>
      %59 = vector.shape_cast %58 : vector<1xf32> to vector<1x1x1xf32>
      %60 = vector.extract %59[0, 0, 0] : f32 from vector<1x1x1xf32>
      %c0_29 = arith.constant 0 : index
      %c0_30 = arith.constant 0 : index
      %61 = vector.load %arg9[%c0_29, %c0_30] : memref<8x1xf32, #tpu.memory_space<vmem>>, vector<8x1xf32>
      %62 = vector.shape_cast %61 : vector<8x1xf32> to vector<1x8x1xf32>
      %cst_31 = arith.constant dense<0.000000e+00> : vector<1xf32>
      %63 = vector.multi_reduction <add>, %62, %cst_31 [1, 2] : vector<1x8x1xf32> to vector<1xf32>
      %64 = vector.shape_cast %63 : vector<1xf32> to vector<1x1x1xf32>
      %65 = vector.extract %64[0, 0, 0] : f32 from vector<1x1x1xf32>
      %66 = tpu.iota {dimensions = array<i32: 1>} : vector<1x8x128xi32>
      %67 = tpu.iota {dimensions = array<i32: 2>} : vector<1x8x128xi32>
      %c0_i32_32 = arith.constant 0 : i32
      %68 = vector.broadcast %c0_i32_32 : i32 to vector<1x8x128xi32>
      %69 = arith.cmpi eq, %66, %68 : vector<1x8x128xi32>
      %c0_i32_33 = arith.constant 0 : i32
      %70 = vector.broadcast %c0_i32_33 : i32 to vector<1x8x128xi32>
      %71 = arith.cmpi eq, %67, %70 : vector<1x8x128xi32>
      %72 = arith.andi %69, %71 : vector<1x8x128xi1>
      %c0_i32_34 = arith.constant 0 : i32
      %73 = vector.broadcast %c0_i32_34 : i32 to vector<1x8x128xi32>
      %74 = arith.cmpi eq, %66, %73 : vector<1x8x128xi32>
      %c1_i32_35 = arith.constant 1 : i32
      %75 = vector.broadcast %c1_i32_35 : i32 to vector<1x8x128xi32>
      %76 = arith.cmpi eq, %67, %75 : vector<1x8x128xi32>
      %77 = arith.andi %74, %76 : vector<1x8x128xi1>
      %cst_36 = arith.constant 0.000000e+00 : f32
      %78 = vector.broadcast %65 : f32 to vector<1x8x128xf32>
      %79 = vector.broadcast %cst_36 : f32 to vector<1x8x128xf32>
      %80 = arith.select %77, %78, %79 : vector<1x8x128xi1>, vector<1x8x128xf32>
      %81 = vector.broadcast %60 : f32 to vector<1x8x128xf32>
      %82 = arith.select %72, %81, %80 : vector<1x8x128xi1>, vector<1x8x128xf32>
      %c0_37 = arith.constant 0 : index
      %c0_38 = arith.constant 0 : index
      %c0_39 = arith.constant 0 : index
      %83 = vector.load %arg7[%c0_37, %c0_38, %c0_39] : memref<1x8x128xf32, #tpu.memory_space<vmem>>, vector<1x8x128xf32>
      tpu.vector_store %arg7[%c0_37, %c0_38, %c0_39], %82 {strides = array<i32>} : memref<1x8x128xf32, #tpu.memory_space<vmem>>, vector<1x8x128xf32>,
    } else {
    }
    return
  }
  func.func @transform_0(%arg0: i32, %arg1: i32, %arg2: memref<1xi32, #tpu.memory_space<smem>>) -> (i32, i32) {
    %c1_i32 = arith.constant 1 : i32
    %0 = arith.muli %arg0, %c1_i32 : i32
    %1 = arith.addi %0, %arg1 : i32
    %c0_i32 = arith.constant 0 : i32
    %2 = arith.minsi %1, %c0_i32 : i32
    %c0_i32_0 = arith.constant 0 : i32
    %c0_i32_1 = arith.constant 0 : i32
    return %2, %c0_i32_0 : i32, i32
  }
  func.func @transform_1(%arg0: i32, %arg1: i32, %arg2: memref<1xi32, #tpu.memory_space<smem>>) -> (i32, i32) {
    %c1_i32 = arith.constant 1 : i32
    %0 = arith.muli %arg0, %c1_i32 : i32
    %1 = arith.addi %0, %arg1 : i32
    %c0_i32 = arith.constant 0 : i32
    %2 = arith.minsi %1, %c0_i32 : i32
    %c0_i32_0 = arith.constant 0 : i32
    %c0_i32_1 = arith.constant 0 : i32
    return %2, %c0_i32_0 : i32, i32
  }
  func.func @transform_2(%arg0: i32, %arg1: i32, %arg2: memref<1xi32, #tpu.memory_space<smem>>) -> (i32, i32) {
    %c1_i32 = arith.constant 1 : i32
    %0 = arith.muli %arg0, %c1_i32 : i32
    %1 = arith.addi %0, %arg1 : i32
    %c0_i32 = arith.constant 0 : i32
    %2 = arith.minsi %1, %c0_i32 : i32
    %c0_i32_0 = arith.constant 0 : i32
    %c0_i32_1 = arith.constant 0 : i32
    return %2, %c0_i32_0 : i32, i32
  }
  func.func @transform_3(%arg0: i32, %arg1: i32, %arg2: memref<1xi32, #tpu.memory_space<smem>>) -> (i32, i32) {
    %c1_i32 = arith.constant 1 : i32
    %0 = arith.muli %arg0, %c1_i32 : i32
    %1 = arith.addi %0, %arg1 : i32
    %c0_i32 = arith.constant 0 : i32
    %2 = arith.minsi %1, %c0_i32 : i32
    %c0_i32_0 = arith.constant 0 : i32
    %c0_i32_1 = arith.constant 0 : i32
    return %2, %c0_i32_0 : i32, i32
  }
  func.func @transform_4(%arg0: i32, %arg1: i32, %arg2: memref<1xi32, #tpu.memory_space<smem>>) -> (i32, i32, i32) {
    %c0_i32 = arith.constant 0 : i32
    %c0_i32_0 = arith.constant 0 : i32
    %c0_i32_1 = arith.constant 0 : i32
    return %arg0, %c0_i32, %c0_i32_0 : i32, i32, i32
  }
}

</mosaic_0001>

<llo_original>
// kernel: tpu_custom_call.1
$region0: #{tpu_custom_call.1}
  #allocation0 [shape = 'u32[]', space=smem, size = 0x4, offset = 0x4, fixed_abs, tag = 'smem constant byte address 0x4 - core index']
  #allocation1 [shape = 'u32[72,128]{1,0:T(1,128)}', space=vmem, size = 0x9000, scoped, tag = 'internal scratch']
  #allocation2 [shape = 'f32[8,1]{1,0:T(8,128)}', space=vmem, size = 0x1000, scoped, tag = 'scratch operand']
  #allocation3 [shape = 'f32[8,1]{1,0:T(8,128)}', space=vmem, size = 0x1000, scoped, tag = 'scratch operand']
  #allocation4 [shape = 's32[1]{0}', space=sflag, size = 0x4, scoped, tag = 'scoped memory for tpu_custom_call.1']
  #allocation5 [shape = 's32[1]{0:T(128)S(6)}', space=smem, size = 0x200, scoped, tag = 'prefetched SMEM operand 0']
  %s0 = inlined_call_operand.<no memory space> [shape: s32[1], index: 0, kind: input, shape index: {}]
  %s1 = inlined_call_operand.hbm [shape: f32[8,32], index: 1, kind: input, shape index: {}]
  %s2 = inlined_call_operand.hbm [shape: f32[8,32], index: 2, kind: input, shape index: {}]
  %s3 = inlined_call_operand.hbm [shape: f32[8,64], index: 3, kind: input, shape index: {}]
  %s4 = inlined_call_operand.hbm [shape: f32[8,64], index: 4, kind: input, shape index: {}]
  %s5 = inlined_call_operand.hbm [shape: f32[1,8,128], index: 5, kind: output, shape index: {}]
  %s6 = sld [smem:[#allocation0]]
  $region50: #{tpu_custom_call.1} parent=0
    _
  %s8 = ssub.s32 1, %s6
  %s9 = scalar_select 0, %s8, %s6
  %10 = sst [smem:[#allocation5]] %s0
  $region1: #{tpu_custom_call.1} parent=0
    #allocation6 [shape = 'u8[4096]{0}', space=vmem, size = 0x1000, scoped, tag = 'input window, operand 1, single buffered']
    #allocation7 [shape = 's32[1]{0}', space=sflag, size = 0x4, scoped, tag = 'scoped memory for tpu_custom_call.1']
    #allocation8 [shape = 's32[1]{0}', space=sflag, size = 0x4, scoped, tag = 'scoped memory for tpu_custom_call.1']
    #allocation9 [shape = 'u8[4096]{0}', space=vmem, size = 0x1000, scoped, tag = 'input window, operand 2, single buffered']
    #allocation10 [shape = 's32[1]{0}', space=sflag, size = 0x4, scoped, tag = 'scoped memory for tpu_custom_call.1']
    #allocation11 [shape = 'u8[4096]{0}', space=vmem, size = 0x1000, scoped, tag = 'input window, operand 3, single buffered']
    #allocation12 [shape = 'u8[4096]{0}', space=vmem, size = 0x1000, scoped, tag = 'input window, operand 4, single buffered']
    #allocation13 [shape = 's32[1]{0}', space=sflag, size = 0x4, scoped, tag = 'scoped memory for tpu_custom_call.1']
    #allocation14 [shape = 'u8[4096]{0}', space=vmem, size = 0x1000, scoped, tag = 'output window, operand 0, single buffered']
    %11 = vsyncpa [#allocation7], 0
    %12 = vsyncpa [#allocation10], 0
    %13 = vsyncpa [#allocation13], 0
    %14 = vsyncpa [#allocation8], 0
    // Predicated region
    $region2: #{tpu_custom_call.1} parent=1 // pred_check
      _
    $region3: #{tpu_custom_call.1} parent=1 // pred_check_branch
      %16 = sbr.rel (0) target = $region5
    $region4: #{tpu_custom_call.1} parent=1 // pred_region
      %s17 = sadd.s32 0, 0
      %p18 = scmp.lt.s32.totalorder %s17, 0
      %s19 = scalar_select %p18, %s17, 0
      %21 = vsyncadd [#allocation7], 0
      %s22 = smul.addr %s19, 8
      %s23 = scalar_lea.hbm %s1, %s22
      %s25 = sshll.u32 %s23, 4
      %s26 = int_to_ptr.hbm [resolvable:$true] %s25
      %s27 = sshll.u32 [#allocation6], 4
      %s28 = int_to_ptr.vmem [resolvable:$true] %s27
      %30 = dma.hbm_to_vmem [thread:$0]  %s26, 128, %s28, [#allocation7]
    $region5: #{tpu_custom_call.1} parent=1 // pred_fallthru
      _
    // Predicated region
    $region6: #{tpu_custom_call.1} parent=1 // pred_check
      _
    $region7: #{tpu_custom_call.1} parent=1 // pred_check_branch
      %32 = sbr.rel (0) target = $region9
    $region8: #{tpu_custom_call.1} parent=1 // pred_region
      %s33 = sadd.s32 0, 0
      %p34 = scmp.lt.s32.totalorder %s33, 0
      %s35 = scalar_select %p34, %s33, 0
      %37 = vsyncadd [#allocation10], 0
      %s38 = smul.addr %s35, 8
      %s39 = scalar_lea.hbm %s2, %s38
      %s41 = sshll.u32 %s39, 4
      %s42 = int_to_ptr.hbm [resolvable:$true] %s41
      %s43 = sshll.u32 [#allocation9], 4
      %s44 = int_to_ptr.vmem [resolvable:$true] %s43
      %46 = dma.hbm_to_vmem [thread:$0]  %s42, 128, %s44, [#allocation10]
    $region9: #{tpu_custom_call.1} parent=1 // pred_fallthru
      _
    // Predicated region
    $region10: #{tpu_custom_call.1} parent=1 // pred_check
      _
    $region11: #{tpu_custom_call.1} parent=1 // pred_check_branch
      %48 = sbr.rel (0) target = $region13
    $region12: #{tpu_custom_call.1} parent=1 // pred_region
      %s49 = sadd.s32 0, 0
      %p50 = scmp.lt.s32.totalorder %s49, 0
      %s51 = scalar_select %p50, %s49, 0
      %53 = vsyncadd [#allocation10], 0
      %s54 = smul.addr %s51, 8
      %s55 = scalar_lea.hbm %s3, %s54
      %s57 = sshll.u32 %s55, 4
      %s58 = int_to_ptr.hbm [resolvable:$true] %s57
      %s59 = sshll.u32 [#allocation11], 4
      %s60 = int_to_ptr.vmem [resolvable:$true] %s59
      %62 = dma.hbm_to_vmem [thread:$0]  %s58, 128, %s60, [#allocation10]
    $region13: #{tpu_custom_call.1} parent=1 // pred_fallthru
      _
    // Predicated region
    $region14: #{tpu_custom_call.1} parent=1 // pred_check
      _
    $region15: #{tpu_custom_call.1} parent=1 // pred_check_branch
      %64 = sbr.rel (0) target = $region17
    $region16: #{tpu_custom_call.1} parent=1 // pred_region
      %s65 = sadd.s32 0, 0
      %p66 = scmp.lt.s32.totalorder %s65, 0
      %s67 = scalar_select %p66, %s65, 0
      %69 = vsyncadd [#allocation13], 0
      %s70 = smul.addr %s67, 8
      %s71 = scalar_lea.hbm %s4, %s70
      %s73 = sshll.u32 %s71, 4
      %s74 = int_to_ptr.hbm [resolvable:$true] %s73
      %s75 = sshll.u32 [#allocation12], 4
      %s76 = int_to_ptr.vmem [resolvable:$true] %s75
      %78 = dma.hbm_to_vmem [thread:$0]  %s74, 128, %s76, [#allocation13]
    $region17: #{tpu_custom_call.1} parent=1 // pred_fallthru
      _
    // Predicated region
    $region18: #{tpu_custom_call.1} parent=1 // pred_check
      _
    $region19: #{tpu_custom_call.1} parent=1 // pred_check_branch
      %80 = sbr.rel (0) target = $region21
    $region20: #{tpu_custom_call.1} parent=1 // pred_region
      %82 = dma.done [#allocation7], 128
    $region21: #{tpu_custom_call.1} parent=1 // pred_fallthru
      _
    // Predicated region
    $region22: #{tpu_custom_call.1} parent=1 // pred_check
      _
    $region23: #{tpu_custom_call.1} parent=1 // pred_check_branch
      %84 = sbr.rel (0) target = $region25
    $region24: #{tpu_custom_call.1} parent=1 // pred_region
      %86 = dma.done [#allocation10], 128
    $region25: #{tpu_custom_call.1} parent=1 // pred_fallthru
      _
    // Predicated region
    $region26: #{tpu_custom_call.1} parent=1 // pred_check
      _
    $region27: #{tpu_custom_call.1} parent=1 // pred_check_branch
      %88 = sbr.rel (0) target = $region29
    $region28: #{tpu_custom_call.1} parent=1 // pred_region
      %90 = dma.done [#allocation10], 128
    $region29: #{tpu_custom_call.1} parent=1 // pred_fallthru
      _
    // Predicated region
    $region30: #{tpu_custom_call.1} parent=1 // pred_check
      _
    $region31: #{tpu_custom_call.1} parent=1 // pred_check_branch
      %92 = sbr.rel (0) target = $region33
    $region32: #{tpu_custom_call.1} parent=1 // pred_region
      %94 = dma.done [#allocation13], 128
    $region33: #{tpu_custom_call.1} parent=1 // pred_fallthru
      _
    %s95 = sadd.s32 0, 0
    %p96 = scmp.lt.s32.totalorder %s95, 0
    %s97 = scalar_select %p96, %s95, 0
    %s98 = sadd.s32 0, 0
    %p99 = scmp.lt.s32.totalorder %s98, 0
    %s100 = scalar_select %p99, %s98, 0
    %s101 = sadd.s32 0, 0
    %p102 = scmp.lt.s32.totalorder %s101, 0
    %s103 = scalar_select %p102, %s101, 0
    %s104 = sadd.s32 0, 0
    %p105 = scmp.lt.s32.totalorder %s104, 0
    %s106 = scalar_select %p105, %s104, 0
    %p107 = scmp.eq.s32.totalorder 0, 0
    // Predicated region
    $region34: #{tpu_custom_call.1} parent=1 // pred_check
      %p108 = pneg %p107
    $region35: #{tpu_custom_call.1} parent=1 // pred_check_branch
      %110 = sbr.rel (%p108) target = $region37
    $region36: #{tpu_custom_call.1} parent=1 // pred_region
      %vm111 = vcmask 7168
      %112 = vst.msk [vmem:[#allocation2] sm:$0xff] %vm111, 0.0
      %113 = vst.msk [vmem:[#allocation3] sm:$0xff] %vm111, 0.0
    $region37: #{tpu_custom_call.1} parent=1 // pred_fallthru
      _
    %s114 = sadd.s32 0, 0
    %s115 = smul.u32 %s114, 8
    %v116 = vlaneseq
    %v117 = vshrl.u32 %v116, 7
    %v118 = vstv %s115
    %v119 = vadd.s32 %v118, %v117
    %s120 = sld [smem:[#allocation5]]
    %v121 = vstv %s120
    %vm122 = vcmp.lt.s32.totalorder %v119, %v121
    %v123 = vld [vmem:[#allocation6] sm:$0xff]
    %v124 = vld [vmem:[#allocation9] sm:$0xff]
    %v125 = vsub.f32 %v123, %v124
    %v126 = vsel %vm122, 1, 0
    %vm127 = vcmp.eq.s32.totalorder %v126, 1
    %v128 = vsel %vm127, %v125, 0.0
    %v129 = vld [vmem:[#allocation2] sm:$0xff]
    %v130 = vmul.f32 %v128, %v128
    %vm131 = vcmask 261120
    %v132 = vsel %vm131, %v130, 0.0
    %133 = vadd.xlane.f32.xlu0 %v132
    %v134 = vpop.xlane.xlu0 %133
    %v135 = vadd.f32 %v129, %v134
    %vm136 = vcmask 7168
    %137 = vst.msk [vmem:[#allocation2] sm:$0xff] %vm136, %v135
    %v138 = vld [vmem:[#allocation11] sm:$0xff]
    %v139 = vsel %vm127, %v138, 0.0
    %v140 = vld [vmem:[#allocation12] sm:$0xff]
    %v141 = vsel %vm127, %v140, 0.0
    %vm142 = vcmask 523264
    %v143 = vsel %vm142, %v139, -inf
    %144 = vmax.xlane.f32.xlu0 %v143
    %v145 = vpop.xlane.xlu0 %144
    %v146 = vsub.f32 %v139, %v145
    %v147 = vmul.f32 %v146, 1.442695
    %v148 = vpow.pop %v147
    %v149 = vsel %vm142, %v148, 0.0
    %150 = vadd.xlane.f32.xlu0 %v149
    %v151 = vpop.xlane.xlu0 %150
    %v152 = vlog2.pop %v151
    %v153 = vmul.f32 %v152, 0.6931472
    %v154 = vsel %vm142, %v141, 0.0
    %155 = vadd.xlane.f32.xlu0 %v154
    %v156 = vpop.xlane.xlu0 %155
    %v157 = vmul.f32 %v141, %v146
    %v158 = vsel %vm142, %v157, 0.0
    %159 = vadd.xlane.f32.xlu0 %v158
    %v160 = vpop.xlane.xlu0 %159
    %v161 = vld [vmem:[#allocation3] sm:$0xff]
    %v162 = vmul.f32 %v153, %v156
    %v163 = vsub.f32 %v162, %v160
    %v164 = vadd.f32 %v161, %v163
    %165 = vst.msk [vmem:[#allocation3] sm:$0xff] %vm136, %v164
    // Predicated region
    $region38: #{tpu_custom_call.1} parent=1 // pred_check
      %p166 = pneg %p107
    $region39: #{tpu_custom_call.1} parent=1 // pred_check_branch
      %168 = sbr.rel (%p166) target = $region41
    $region40: #{tpu_custom_call.1} parent=1 // pred_region
      %v169 = vld [vmem:[#allocation2] sm:$0xff]
      %v170 = vsel %vm136, %v169, 0.0
      %171 = vadd.xlane.f32.xlu0 %v170
      %v172 = vpop.xlane.xlu0 %171
      %v173 = vrot.slane %v172, 4
      %v174 = vadd.f32 %v172, %v173
      %v175 = vrot.slane %v174, 2
      %v176 = vadd.f32 %v174, %v175
      %v177 = vrot.slane %v176, 1
      %v178 = vadd.f32 %v176, %v177
      %s179 = vtos %v178
      %v180 = vld [vmem:[#allocation3] sm:$0xff]
      %v181 = vsel %vm136, %v180, 0.0
      %182 = vadd.xlane.f32.xlu0 %v181
      %v183 = vpop.xlane.xlu0 %182
      %v184 = vrot.slane %v183, 4
      %v185 = vadd.f32 %v183, %v184
      %v186 = vrot.slane %v185, 2
      %v187 = vadd.f32 %v185, %v186
      %v188 = vrot.slane %v187, 1
      %v189 = vadd.f32 %v187, %v188
      %s190 = vtos %v189
      %v191 = vlaneseq
      %v192 = vand.u32 %v191, 127
      %vm193 = vcmp.eq.s32.totalorder %v117, 0
      %vm194 = vcmp.eq.s32.totalorder %v192, 0
      %vm195 = vmand %vm193, %vm194
      %vm196 = vcmp.eq.s32.totalorder %v192, 1
      %vm197 = vmand %vm193, %vm196
      %v198 = vstv %s190
      %v199 = vsel %vm197, %v198, 0.0
      %v200 = vstv %s179
      %v201 = vsel %vm195, %v200, %v199
      %202 = vst [vmem:[#allocation14] sm:$0xff] %v201
    $region41: #{tpu_custom_call.1} parent=1 // pred_fallthru
      _
    // Predicated region
    $region42: #{tpu_custom_call.1} parent=1 // pred_check
      _
    $region43: #{tpu_custom_call.1} parent=1 // pred_check_branch
      %204 = sbr.rel (0) target = $region45
    $region44: #{tpu_custom_call.1} parent=1 // pred_region
      %206 = vsyncadd [#allocation8], 0
      %s208 = sshll.u32 [#allocation14], 4
      %s209 = int_to_ptr.vmem [resolvable:$true] %s208
      %s210 = sshll.u32 %s5, 4
      %s211 = int_to_ptr.hbm [resolvable:$true] %s210
      %213 = dma.vmem_to_hbm [thread:$0]  %s209, 128, %s211, [#allocation8]
    $region45: #{tpu_custom_call.1} parent=1 // pred_fallthru
      _
    // Predicated region
    $region46: #{tpu_custom_call.1} parent=1 // pred_check
      _
    $region47: #{tpu_custom_call.1} parent=1 // pred_check_branch
      %215 = sbr.rel (0) target = $region49
    $region48: #{tpu_custom_call.1} parent=1 // pred_region
      %217 = dma.done [#allocation8], 128
    $region49: #{tpu_custom_call.1} parent=1 // pred_fallthru
      _
    %218 = vsyncpa [#allocation7], 1
    %219 = vsyncpa [#allocation10], 1
    %220 = vsyncpa [#allocation13], 1
    %221 = vsyncpa [#allocation8], 1

</llo_original>
